<compile_context>
chip_gen: v7x
topology: tpu7x:2x2x1
jax: 0.10.0
libtpu: 0.0.40
codegen_flags: <defaults>
</compile_context>

<pallas_src>
import functools
import math

import jax
import jax.numpy as jnp
from jax import lax
from jax.experimental import pallas as pl
from jax.experimental.pallas import tpu as pltpu

LN_EPS = 1e-5
_GELU_C = math.sqrt(2.0 / math.pi)
_MXU_DTYPE = jnp.bfloat16          # MXU operand dtype (accumulation is f32)


def _layer_norm(x, gamma, beta):
    # x: [R, D] f32; gamma/beta: [1, D] f32
    mean = jnp.mean(x, axis=-1, keepdims=True)
    centered = x - mean
    var = jnp.mean(centered * centered, axis=-1, keepdims=True)
    inv = lax.rsqrt(var + LN_EPS)
    return centered * inv * gamma + beta


def _gelu_new(x):
    return 0.5 * x * (1.0 + jnp.tanh(_GELU_C * (x + 0.044715 * x * x * x)))


# ---------------------------------------------------------------------------
# Kernel 1: LayerNorm(ln_1) + QKV projection (c_attn), emitted head-major.
# Grid: (B, S // TS).  Blocks: x (1, TS, D); weights resident; q/k/v blocks
# (n_head, 1, TS, d_k) of head-major [H, B, S, d_k] bf16 arrays.
# ---------------------------------------------------------------------------
def _ln_qkv_kernel(x_ref, g1_ref, b1_ref, wq_ref, wk_ref, wv_ref,
                   bq_ref, bk_ref, bv_ref, q_ref, k_ref, v_ref,
                   *, n_head, d_k):
    nx = _layer_norm(x_ref[0], g1_ref[...], b1_ref[...])          # [TS, D] f32
    nx_mxu = nx.astype(_MXU_DTYPE)
    q = jnp.dot(nx_mxu, wq_ref[...], preferred_element_type=jnp.float32) + bq_ref[...]
    k = jnp.dot(nx_mxu, wk_ref[...], preferred_element_type=jnp.float32) + bk_ref[...]
    v = jnp.dot(nx_mxu, wv_ref[...], preferred_element_type=jnp.float32) + bv_ref[...]
    # Head-split stores -> head-major layout so attention gets lane-dense
    # (S, d_k) tiles straight from BlockSpec DMA (no per-head masked loads).
    for h in range(n_head):                                        # static unroll
        sl = slice(h * d_k, (h + 1) * d_k)
        q_ref[h, 0] = q[:, sl].astype(_MXU_DTYPE)
        k_ref[h, 0] = k[:, sl].astype(_MXU_DTYPE)
        v_ref[h, 0] = v[:, sl].astype(_MXU_DTYPE)


# ---------------------------------------------------------------------------
# Kernel 2: one (batch, head) per grid step. Softmax attention + the per-head
# slice of c_proj, accumulated over the head ("arbitrary") grid axis, so the
# merged-head context never goes back to HBM and no lane merge is required.
# ---------------------------------------------------------------------------
def _attn_head_kernel(q_ref, k_ref, v_ref, mask_ref, wph_ref, bp_ref,
                      a_ref, probs_ref, *, scale):
    h = pl.program_id(1)
    q = q_ref[0, 0]                                                # [S, d_k] bf16
    k = k_ref[0, 0]
    v = v_ref[0, 0]

    # q @ k^T without an explicit transpose; f32 accumulation on the MXU.
    scores = lax.dot_general(q, k, (((1,), (1,)), ((), ())),
                             preferred_element_type=jnp.float32)   # [S, S]
    scores = scores * scale + mask_ref[...]                        # additive mask, host-prepped

    m = jnp.max(scores, axis=-1, keepdims=True)
    e = jnp.exp(scores - m)
    denom = jnp.sum(e, axis=-1, keepdims=True)
    probs = e / denom              # exact div: probs compared against f32 reference
    probs_ref[0, 0] = probs
    # TODO(synk): attention-prob dropout is identity (eval mode).

    ctx = jnp.dot(probs.astype(_MXU_DTYPE), v,
                  preferred_element_type=jnp.float32)              # [S, d_k]
    contrib = jnp.dot(ctx.astype(_MXU_DTYPE), wph_ref[0],
                      preferred_element_type=jnp.float32)          # [S, D] c_proj head slice

    s, d = a_ref.shape[1], a_ref.shape[2]

    @pl.when(h == 0)
    def _():
        a_ref[0] = jnp.broadcast_to(bp_ref[...], (s, d))           # init with c_proj bias

    a_ref[0] += contrib


# ---------------------------------------------------------------------------
# Kernel 3: residual 1 + LayerNorm(ln_2) + MLP(gelu_new) + residual 2.
# Grid: (B, S // TS); MLP weights VMEM-resident (bf16) across all steps.
# ---------------------------------------------------------------------------
def _mlp_kernel(x_ref, a_ref, g2_ref, b2_ref, wfc_ref, bfc_ref,
                wp2_ref, bp2_ref, out_ref):
    x1 = x_ref[0] + a_ref[0]                                       # residual 1 (f32)
    nx2 = _layer_norm(x1, g2_ref[...], b2_ref[...])
    hmid = jnp.dot(nx2.astype(_MXU_DTYPE), wfc_ref[...],
                   preferred_element_type=jnp.float32) + bfc_ref[...]
    hmid = _gelu_new(hmid)                                         # f32 elementwise
    m = jnp.dot(hmid.astype(_MXU_DTYPE), wp2_ref[...],
                preferred_element_type=jnp.float32) + bp2_ref[...]
    out_ref[0] = x1 + m                                            # residual 2
    # TODO(synk): MLP dropout is identity (eval mode).
    # TODO(synk): on v7x with very large d_ff, stream w_fc/w_proj2 over a
    # d_ff reduction grid axis instead of keeping both resident.


# ---------------------------------------------------------------------------
# Wrapper
# ---------------------------------------------------------------------------
def gpt2_transformer_block(x, look_ahead_mask, params, *, n_head, seq_tile=512):
    B, S, D = x.shape
    d_ff = params["w_fc"].shape[1]
    assert D % n_head == 0
    d_k = D // n_head

    # Sequence tile for the row-wise kernels (no padding: TS divides S).
    TS = seq_tile if (S % seq_tile == 0) else S
    n_seq_tiles = S // TS

    # One-time parameter prep (cast MXU weights to bf16, split / head-group).
    # In a real model these would be cached outside the forward pass.
    mxu = _MXU_DTYPE
    w_q, w_k, w_v = (w.astype(mxu) for w in jnp.split(params["w_qkv"], 3, axis=1))
    b_q, b_k, b_v = jnp.split(params["b_qkv"], 3, axis=1)
    w_proj_hm = params["w_proj"].reshape(n_head, d_k, D).astype(mxu)   # per-head c_proj slices
    w_fc = params["w_fc"].astype(mxu)
    w_p2 = params["w_proj2"].astype(mxu)
    add_mask = ((1.0 - look_ahead_mask) * (-10000.0)).astype(jnp.float32)

    shared2 = lambda b, j: (0, 0)
    rowmap3 = lambda b, j: (b, j, 0)

    # --- Kernel 1: LN1 + QKV (head-major bf16 outputs) ---
    q_hm, k_hm, v_hm = pl.pallas_call(
        functools.partial(_ln_qkv_kernel, n_head=n_head, d_k=d_k),
        out_shape=tuple(jax.ShapeDtypeStruct((n_head, B, S, d_k), mxu)
                        for _ in range(3)),
        grid_spec=pltpu.PrefetchScalarGridSpec(
            num_scalar_prefetch=0,
            grid=(B, n_seq_tiles),
            in_specs=[
                pl.BlockSpec((1, TS, D), rowmap3),        # x
                pl.BlockSpec((1, D), shared2),            # ln_1 gamma
                pl.BlockSpec((1, D), shared2),            # ln_1 beta
                pl.BlockSpec((D, D), shared2),            # W_q (bf16, resident)
                pl.BlockSpec((D, D), shared2),            # W_k
                pl.BlockSpec((D, D), shared2),            # W_v
                pl.BlockSpec((1, D), shared2),            # b_q
                pl.BlockSpec((1, D), shared2),            # b_k
                pl.BlockSpec((1, D), shared2),            # b_v
            ],
            out_specs=[pl.BlockSpec((n_head, 1, TS, d_k),
                                    lambda b, j: (0, b, j, 0))] * 3,
        ),
        compiler_params=pltpu.CompilerParams(
            dimension_semantics=("parallel", "parallel"),
            vmem_limit_bytes=64 * 1024 * 1024),
    )(x, params["g1"], params["b1"], w_q, w_k, w_v, b_q, b_k, b_v)

    # --- Kernel 2: per-(batch, head) attention + fused per-head c_proj ---
    scale = 1.0 / math.sqrt(d_k)
    a, probs = pl.pallas_call(
        functools.partial(_attn_head_kernel, scale=scale),
        out_shape=(
            jax.ShapeDtypeStruct((B, S, D), jnp.float32),             # a = c_proj(merge_heads(ctx))
            jax.ShapeDtypeStruct((B, n_head, S, S), jnp.float32),     # probs (f32 for exact compare)
        ),
        grid_spec=pltpu.PrefetchScalarGridSpec(
            num_scalar_prefetch=0,
            grid=(B, n_head),
            in_specs=[
                pl.BlockSpec((1, 1, S, d_k), lambda b, h: (h, b, 0, 0)),   # q
                pl.BlockSpec((1, 1, S, d_k), lambda b, h: (h, b, 0, 0)),   # k
                pl.BlockSpec((1, 1, S, d_k), lambda b, h: (h, b, 0, 0)),   # v
                pl.BlockSpec((S, S), lambda b, h: (0, 0)),                 # additive mask
                pl.BlockSpec((1, d_k, D), lambda b, h: (h, 0, 0)),         # W_proj head slice
                pl.BlockSpec((1, D), lambda b, h: (0, 0)),                 # b_proj
            ],
            out_specs=[
                pl.BlockSpec((1, S, D), lambda b, h: (b, 0, 0)),           # a (accumulated over h)
                pl.BlockSpec((1, 1, S, S), lambda b, h: (b, h, 0, 0)),     # probs
            ],
        ),
        compiler_params=pltpu.CompilerParams(
            dimension_semantics=("parallel", "arbitrary")),
    )(q_hm, k_hm, v_hm, add_mask, w_proj_hm, params["b_proj"])

    # --- Kernel 3: residual + LN2 + MLP + residual ---
    x_out = pl.pallas_call(
        _mlp_kernel,
        out_shape=jax.ShapeDtypeStruct((B, S, D), jnp.float32),
        grid_spec=pltpu.PrefetchScalarGridSpec(
            num_scalar_prefetch=0,
            grid=(B, n_seq_tiles),
            in_specs=[
                pl.BlockSpec((1, TS, D), rowmap3),        # x (residual)
                pl.BlockSpec((1, TS, D), rowmap3),        # a (attention branch output)
                pl.BlockSpec((1, D), shared2),            # ln_2 gamma
                pl.BlockSpec((1, D), shared2),            # ln_2 beta
                pl.BlockSpec((D, d_ff), shared2),         # c_fc weight (bf16, resident)
                pl.BlockSpec((1, d_ff), shared2),         # c_fc bias
                pl.BlockSpec((d_ff, D), shared2),         # mlp c_proj weight (bf16, resident)
                pl.BlockSpec((1, D), shared2),            # mlp c_proj bias
            ],
            out_specs=pl.BlockSpec((1, TS, D), rowmap3),
        ),
        compiler_params=pltpu.CompilerParams(
            dimension_semantics=("parallel", "parallel"),
            vmem_limit_bytes=64 * 1024 * 1024),
    )(x, a, params["g2"], params["b2"], w_fc, params["b_fc"],
      w_p2, params["b_proj2"])

    return x_out, probs


# ---------------------------------------------------------------------------
# Pure-JAX f32 reference (mirrors the PyTorch module in eval mode).
# ---------------------------------------------------------------------------
def _reference(x, mask, p, n_head):
    B, S, D = x.shape
    d_k = D // n_head
    hp = jax.lax.Precision.HIGHEST

    def ln(z, g, b):
        mu = jnp.mean(z, axis=-1, keepdims=True)
        var = jnp.mean((z - mu) ** 2, axis=-1, keepdims=True)
        return (z - mu) / jnp.sqrt(var + LN_EPS) * g + b

    nx = ln(x, p["g1"], p["b1"])
    qkv = jnp.einsum("bsd,df->bsf", nx, p["w_qkv"], precision=hp) + p["b_qkv"]
    q, k, v = jnp.split(qkv, 3, axis=-1)

    def split_heads(t):
        return t.reshape(B, S, n_head, d_k).transpose(0, 2, 1, 3)

    q, k, v = split_heads(q), split_heads(k), split_heads(v)
    scores = jnp.einsum("bhid,bhjd->bhij", q, k, precision=hp) / math.sqrt(d_k)
    scores = scores + (1.0 - mask) * (-10000.0)
    probs = jax.nn.softmax(scores, axis=-1)
    ctx = jnp.einsum("bhij,bhjd->bhid", probs, v, precision=hp)
    ctx = ctx.transpose(0, 2, 1, 3).reshape(B, S, D)

    a = jnp.einsum("bsd,df->bsf", ctx, p["w_proj"], precision=hp) + p["b_proj"]
    x1 = x + a
    nx2 = ln(x1, p["g2"], p["b2"])
    h = jnp.einsum("bsd,df->bsf", nx2, p["w_fc"], precision=hp) + p["b_fc"]
    h = 0.5 * h * (1.0 + jnp.tanh(_GELU_C * (h + 0.044715 * h ** 3)))
    m = jnp.einsum("bsf,fd->bsd", h, p["w_proj2"], precision=hp) + p["b_proj2"]
    return x1 + m, probs


if __name__ == "__main__":
    B, S = 2, 8
    d_model, n_head, d_ff = 32, 4, 128

    key = jax.random.PRNGKey(0)
    keys = jax.random.split(key, 16)

    def normal(k, shape, std=0.02):
        return std * jax.random.normal(k, shape, dtype=jnp.float32)

    params = {
        "g1": 1.0 + normal(keys[0], (1, d_model)),
        "b1": normal(keys[1], (1, d_model)),
        "w_qkv": normal(keys[2], (d_model, 3 * d_model)),
        "b_qkv": normal(keys[3], (1, 3 * d_model)),
        "w_proj": normal(keys[4], (d_model, d_model)),
        "b_proj": normal(keys[5], (1, d_model)),
        "g2": 1.0 + normal(keys[6], (1, d_model)),
        "b2": normal(keys[7], (1, d_model)),
        "w_fc": normal(keys[8], (d_model, d_ff)),
        "b_fc": normal(keys[9], (1, d_ff)),
        "w_proj2": normal(keys[10], (d_ff, d_model)),
        "b_proj2": normal(keys[11], (1, d_model)),
    }

    x = jax.random.normal(keys[12], (B, S, d_model), dtype=jnp.float32)
    # Causal look-ahead mask: 1 where attention is allowed (j <= i), else 0.
    look_ahead_mask = jnp.tril(jnp.ones((S, S), dtype=jnp.float32))

    out, attn = gpt2_transformer_block(x, look_ahead_mask, params,
                                       n_head=n_head)
    jax.block_until_ready((out, attn))

    ref_out, ref_attn = _reference(x, look_ahead_mask, params, n_head)

    assert out.shape == (B, S, d_model)
    assert attn.shape == (B, n_head, S, S)
    # Tolerance reflects bf16 MXU operands (f32 accumulation) vs. the f32
    # HIGHEST-precision reference; elementwise math is f32 in both.
    assert jnp.allclose(out, ref_out, atol=1e-2, rtol=1e-2), \
        float(jnp.max(jnp.abs(out - ref_out)))
    assert jnp.allclose(attn, ref_attn, atol=1e-2, rtol=1e-2), \
        float(jnp.max(jnp.abs(attn - ref_attn)))

    print("KERNEL_OK")
</pallas_src>

<mosaic_0001>
module attributes {stable_mosaic.version = 11 : i64} {
  func.func @_ln_qkv_kernel(%arg0: i32, %arg1: i32, %arg2: memref<1x8x32xf32, #tpu.memory_space<vmem>>, %arg3: memref<1x32xf32, #tpu.memory_space<vmem>>, %arg4: memref<1x32xf32, #tpu.memory_space<vmem>>, %arg5: memref<32x32xbf16, #tpu.memory_space<vmem>>, %arg6: memref<32x32xbf16, #tpu.memory_space<vmem>>, %arg7: memref<32x32xbf16, #tpu.memory_space<vmem>>, %arg8: memref<1x32xf32, #tpu.memory_space<vmem>>, %arg9: memref<1x32xf32, #tpu.memory_space<vmem>>, %arg10: memref<1x32xf32, #tpu.memory_space<vmem>>, %arg11: memref<4x1x8x8xbf16, #tpu.memory_space<vmem>>, %arg12: memref<4x1x8x8xbf16, #tpu.memory_space<vmem>>, %arg13: memref<4x1x8x8xbf16, #tpu.memory_space<vmem>>) attributes {dimension_semantics = [#tpu.dimension_semantics<parallel>, #tpu.dimension_semantics<parallel>], iteration_bounds = array<i64: 2, 1>, scalar_prefetch = 0 : i64, scratch_operands = 0 : i64, tpu.core_type = #tpu.core_type<tc>, window_params = [{transform_indices = @transform_0, window_bounds = array<i64: 1, 8, 32>}, {pipeline_mode = #tpu.pipeline_mode<synchronous>, transform_indices = @transform_1, window_bounds = array<i64: 1, 32>}, {pipeline_mode = #tpu.pipeline_mode<synchronous>, transform_indices = @transform_2, window_bounds = array<i64: 1, 32>}, {pipeline_mode = #tpu.pipeline_mode<synchronous>, transform_indices = @transform_3, window_bounds = array<i64: 32, 32>}, {pipeline_mode = #tpu.pipeline_mode<synchronous>, transform_indices = @transform_4, window_bounds = array<i64: 32, 32>}, {pipeline_mode = #tpu.pipeline_mode<synchronous>, transform_indices = @transform_5, window_bounds = array<i64: 32, 32>}, {pipeline_mode = #tpu.pipeline_mode<synchronous>, transform_indices = @transform_6, window_bounds = array<i64: 1, 32>}, {pipeline_mode = #tpu.pipeline_mode<synchronous>, transform_indices = @transform_7, window_bounds = array<i64: 1, 32>}, {pipeline_mode = #tpu.pipeline_mode<synchronous>, transform_indices = @transform_8, window_bounds = array<i64: 1, 32>}, {transform_indices = @transform_9, window_bounds = array<i64: 4, 1, 8, 8>}, {transform_indices = @transform_10, window_bounds = array<i64: 4, 1, 8, 8>}, {transform_indices = @transform_11, window_bounds = array<i64: 4, 1, 8, 8>}]} {
    %c0 = arith.constant 0 : index
    %c0_0 = arith.constant 0 : index
    %c0_1 = arith.constant 0 : index
    %0 = vector.load %arg2[%c0, %c0_0, %c0_1] : memref<1x8x32xf32, #tpu.memory_space<vmem>>, vector<1x8x32xf32>
    %1 = vector.shape_cast %0 : vector<1x8x32xf32> to vector<8x32xf32>
    %c0_2 = arith.constant 0 : index
    %c0_3 = arith.constant 0 : index
    %2 = vector.load %arg3[%c0_2, %c0_3] : memref<1x32xf32, #tpu.memory_space<vmem>>, vector<1x32xf32>
    %c0_4 = arith.constant 0 : index
    %c0_5 = arith.constant 0 : index
    %3 = vector.load %arg4[%c0_4, %c0_5] : memref<1x32xf32, #tpu.memory_space<vmem>>, vector<1x32xf32>
    %cst = arith.constant dense<0.000000e+00> : vector<8xf32>
    %4 = vector.multi_reduction <add>, %1, %cst [1] : vector<8x32xf32> to vector<8xf32>
    %5 = vector.shape_cast %4 : vector<8xf32> to vector<8x1xf32>
    %cst_6 = arith.constant 3.200000e+01 : f32
    %6 = vector.broadcast %cst_6 : f32 to vector<8x1xf32>
    %7 = arith.divf %5, %6 : vector<8x1xf32>
    %8 = vector.broadcast %7 : vector<8x1xf32> to vector<8x32xf32>
    %9 = arith.subf %1, %8 : vector<8x32xf32>
    %10 = arith.mulf %9, %9 : vector<8x32xf32>
    %cst_7 = arith.constant dense<0.000000e+00> : vector<8xf32>
    %11 = vector.multi_reduction <add>, %10, %cst_7 [1] : vector<8x32xf32> to vector<8xf32>
    %12 = vector.shape_cast %11 : vector<8xf32> to vector<8x1xf32>
    %cst_8 = arith.constant 3.200000e+01 : f32
    %13 = vector.broadcast %cst_8 : f32 to vector<8x1xf32>
    %14 = arith.divf %12, %13 : vector<8x1xf32>
    %cst_9 = arith.constant 9.99999974E-6 : f32
    %15 = vector.broadcast %cst_9 : f32 to vector<8x1xf32>
    %16 = arith.addf %14, %15 : vector<8x1xf32>
    %17 = math.rsqrt %16 : vector<8x1xf32>
    %18 = vector.broadcast %17 : vector<8x1xf32> to vector<8x32xf32>
    %19 = arith.mulf %9, %18 : vector<8x32xf32>
    %20 = vector.broadcast %2 : vector<1x32xf32> to vector<8x32xf32>
    %21 = arith.mulf %19, %20 : vector<8x32xf32>
    %22 = vector.broadcast %3 : vector<1x32xf32> to vector<8x32xf32>
    %23 = arith.addf %21, %22 : vector<8x32xf32>
    %24 = arith.truncf %23 : vector<8x32xf32> to vector<8x32xbf16>
    %c0_10 = arith.constant 0 : index
    %c0_11 = arith.constant 0 : index
    %25 = vector.load %arg5[%c0_10, %c0_11] : memref<32x32xbf16, #tpu.memory_space<vmem>>, vector<32x32xbf16>
    %cst_12 = arith.constant dense<0.000000e+00> : vector<8x32xf32>
    %26 = tpu.matmul %24, %25, %cst_12 {dimension_numbers = #tpu.dot_dimension_numbers<[1], [0], [0], [1], [0, 0, 1, 1], [], []>} : vector<8x32xbf16>, vector<32x32xbf16>, vector<8x32xf32> -> vector<8x32xf32>
    %c0_13 = arith.constant 0 : index
    %c0_14 = arith.constant 0 : index
    %27 = vector.load %arg8[%c0_13, %c0_14] : memref<1x32xf32, #tpu.memory_space<vmem>>, vector<1x32xf32>
    %28 = vector.broadcast %27 : vector<1x32xf32> to vector<8x32xf32>
    %29 = arith.addf %26, %28 : vector<8x32xf32>
    %c0_15 = arith.constant 0 : index
    %c0_16 = arith.constant 0 : index
    %30 = vector.load %arg6[%c0_15, %c0_16] : memref<32x32xbf16, #tpu.memory_space<vmem>>, vector<32x32xbf16>
    %cst_17 = arith.constant dense<0.000000e+00> : vector<8x32xf32>
    %31 = tpu.matmul %24, %30, %cst_17 {dimension_numbers = #tpu.dot_dimension_numbers<[1], [0], [0], [1], [0, 0, 1, 1], [], []>} : vector<8x32xbf16>, vector<32x32xbf16>, vector<8x32xf32> -> vector<8x32xf32>
    %c0_18 = arith.constant 0 : index
    %c0_19 = arith.constant 0 : index
    %32 = vector.load %arg9[%c0_18, %c0_19] : memref<1x32xf32, #tpu.memory_space<vmem>>, vector<1x32xf32>
    %33 = vector.broadcast %32 : vector<1x32xf32> to vector<8x32xf32>
    %34 = arith.addf %31, %33 : vector<8x32xf32>
    %c0_20 = arith.constant 0 : index
    %c0_21 = arith.constant 0 : index
    %35 = vector.load %arg7[%c0_20, %c0_21] : memref<32x32xbf16, #tpu.memory_space<vmem>>, vector<32x32xbf16>
    %cst_22 = arith.constant dense<0.000000e+00> : vector<8x32xf32>
    %36 = tpu.matmul %24, %35, %cst_22 {dimension_numbers = #tpu.dot_dimension_numbers<[1], [0], [0], [1], [0, 0, 1, 1], [], []>} : vector<8x32xbf16>, vector<32x32xbf16>, vector<8x32xf32> -> vector<8x32xf32>
    %c0_23 = arith.constant 0 : index
    %c0_24 = arith.constant 0 : index
    %37 = vector.load %arg10[%c0_23, %c0_24] : memref<1x32xf32, #tpu.memory_space<vmem>>, vector<1x32xf32>
    %38 = vector.broadcast %37 : vector<1x32xf32> to vector<8x32xf32>
    %39 = arith.addf %36, %38 : vector<8x32xf32>
    %40 = vector.extract_strided_slice %29 {offsets = [0, 0], sizes = [8, 8], strides = [1, 1]} : vector<8x32xf32> to vector<8x8xf32>
    %41 = arith.truncf %40 : vector<8x8xf32> to vector<8x8xbf16>
    %c0_25 = arith.constant 0 : index
    %c0_26 = arith.constant 0 : index
    %c0_27 = arith.constant 0 : index
    %c0_28 = arith.constant 0 : index
    %42 = vector.load %arg11[%c0_25, %c0_26, %c0_27, %c0_28] : memref<4x1x8x8xbf16, #tpu.memory_space<vmem>>, vector<1x1x8x8xbf16>
    %43 = vector.shape_cast %42 : vector<1x1x8x8xbf16> to vector<8x8xbf16>
    %44 = vector.shape_cast %41 : vector<8x8xbf16> to vector<1x1x8x8xbf16>
    tpu.vector_store %arg11[%c0_25, %c0_26, %c0_27, %c0_28], %44 {strides = array<i32>} : memref<4x1x8x8xbf16, #tpu.memory_space<vmem>>, vector<1x1x8x8xbf16>,
    %45 = vector.extract_strided_slice %34 {offsets = [0, 0], sizes = [8, 8], strides = [1, 1]} : vector<8x32xf32> to vector<8x8xf32>
    %46 = arith.truncf %45 : vector<8x8xf32> to vector<8x8xbf16>
    %c0_29 = arith.constant 0 : index
    %c0_30 = arith.constant 0 : index
    %c0_31 = arith.constant 0 : index
    %c0_32 = arith.constant 0 : index
    %47 = vector.load %arg12[%c0_29, %c0_30, %c0_31, %c0_32] : memref<4x1x8x8xbf16, #tpu.memory_space<vmem>>, vector<1x1x8x8xbf16>
    %48 = vector.shape_cast %47 : vector<1x1x8x8xbf16> to vector<8x8xbf16>
    %49 = vector.shape_cast %46 : vector<8x8xbf16> to vector<1x1x8x8xbf16>
    tpu.vector_store %arg12[%c0_29, %c0_30, %c0_31, %c0_32], %49 {strides = array<i32>} : memref<4x1x8x8xbf16, #tpu.memory_space<vmem>>, vector<1x1x8x8xbf16>,
    %50 = vector.extract_strided_slice %39 {offsets = [0, 0], sizes = [8, 8], strides = [1, 1]} : vector<8x32xf32> to vector<8x8xf32>
    %51 = arith.truncf %50 : vector<8x8xf32> to vector<8x8xbf16>
    %c0_33 = arith.constant 0 : index
    %c0_34 = arith.constant 0 : index
    %c0_35 = arith.constant 0 : index
    %c0_36 = arith.constant 0 : index
    %52 = vector.load %arg13[%c0_33, %c0_34, %c0_35, %c0_36] : memref<4x1x8x8xbf16, #tpu.memory_space<vmem>>, vector<1x1x8x8xbf16>
    %53 = vector.shape_cast %52 : vector<1x1x8x8xbf16> to vector<8x8xbf16>
    %54 = vector.shape_cast %51 : vector<8x8xbf16> to vector<1x1x8x8xbf16>
    tpu.vector_store %arg13[%c0_33, %c0_34, %c0_35, %c0_36], %54 {strides = array<i32>} : memref<4x1x8x8xbf16, #tpu.memory_space<vmem>>, vector<1x1x8x8xbf16>,
    %55 = vector.extract_strided_slice %29 {offsets = [0, 8], sizes = [8, 8], strides = [1, 1]} : vector<8x32xf32> to vector<8x8xf32>
    %56 = arith.truncf %55 : vector<8x8xf32> to vector<8x8xbf16>
    %c1 = arith.constant 1 : index
    %c0_37 = arith.constant 0 : index
    %c0_38 = arith.constant 0 : index
    %c0_39 = arith.constant 0 : index
    %57 = vector.load %arg11[%c1, %c0_37, %c0_38, %c0_39] : memref<4x1x8x8xbf16, #tpu.memory_space<vmem>>, vector<1x1x8x8xbf16>
    %58 = vector.shape_cast %57 : vector<1x1x8x8xbf16> to vector<8x8xbf16>
    %59 = vector.shape_cast %56 : vector<8x8xbf16> to vector<1x1x8x8xbf16>
    tpu.vector_store %arg11[%c1, %c0_37, %c0_38, %c0_39], %59 {strides = array<i32>} : memref<4x1x8x8xbf16, #tpu.memory_space<vmem>>, vector<1x1x8x8xbf16>,
    %60 = vector.extract_strided_slice %34 {offsets = [0, 8], sizes = [8, 8], strides = [1, 1]} : vector<8x32xf32> to vector<8x8xf32>
    %61 = arith.truncf %60 : vector<8x8xf32> to vector<8x8xbf16>
    %c1_40 = arith.constant 1 : index
    %c0_41 = arith.constant 0 : index
    %c0_42 = arith.constant 0 : index
    %c0_43 = arith.constant 0 : index
    %62 = vector.load %arg12[%c1_40, %c0_41, %c0_42, %c0_43] : memref<4x1x8x8xbf16, #tpu.memory_space<vmem>>, vector<1x1x8x8xbf16>
    %63 = vector.shape_cast %62 : vector<1x1x8x8xbf16> to vector<8x8xbf16>
    %64 = vector.shape_cast %61 : vector<8x8xbf16> to vector<1x1x8x8xbf16>
    tpu.vector_store %arg12[%c1_40, %c0_41, %c0_42, %c0_43], %64 {strides = array<i32>} : memref<4x1x8x8xbf16, #tpu.memory_space<vmem>>, vector<1x1x8x8xbf16>,
    %65 = vector.extract_strided_slice %39 {offsets = [0, 8], sizes = [8, 8], strides = [1, 1]} : vector<8x32xf32> to vector<8x8xf32>
    %66 = arith.truncf %65 : vector<8x8xf32> to vector<8x8xbf16>
    %c1_44 = arith.constant 1 : index
    %c0_45 = arith.constant 0 : index
    %c0_46 = arith.constant 0 : index
    %c0_47 = arith.constant 0 : index
    %67 = vector.load %arg13[%c1_44, %c0_45, %c0_46, %c0_47] : memref<4x1x8x8xbf16, #tpu.memory_space<vmem>>, vector<1x1x8x8xbf16>
    %68 = vector.shape_cast %67 : vector<1x1x8x8xbf16> to vector<8x8xbf16>
    %69 = vector.shape_cast %66 : vector<8x8xbf16> to vector<1x1x8x8xbf16>
    tpu.vector_store %arg13[%c1_44, %c0_45, %c0_46, %c0_47], %69 {strides = array<i32>} : memref<4x1x8x8xbf16, #tpu.memory_space<vmem>>, vector<1x1x8x8xbf16>,
    %70 = vector.extract_strided_slice %29 {offsets = [0, 16], sizes = [8, 8], strides = [1, 1]} : vector<8x32xf32> to vector<8x8xf32>
    %71 = arith.truncf %70 : vector<8x8xf32> to vector<8x8xbf16>
    %c2 = arith.constant 2 : index
    %c0_48 = arith.constant 0 : index
    %c0_49 = arith.constant 0 : index
    %c0_50 = arith.constant 0 : index
    %72 = vector.load %arg11[%c2, %c0_48, %c0_49, %c0_50] : memref<4x1x8x8xbf16, #tpu.memory_space<vmem>>, vector<1x1x8x8xbf16>
    %73 = vector.shape_cast %72 : vector<1x1x8x8xbf16> to vector<8x8xbf16>
    %74 = vector.shape_cast %71 : vector<8x8xbf16> to vector<1x1x8x8xbf16>
    tpu.vector_store %arg11[%c2, %c0_48, %c0_49, %c0_50], %74 {strides = array<i32>} : memref<4x1x8x8xbf16, #tpu.memory_space<vmem>>, vector<1x1x8x8xbf16>,
    %75 = vector.extract_strided_slice %34 {offsets = [0, 16], sizes = [8, 8], strides = [1, 1]} : vector<8x32xf32> to vector<8x8xf32>
    %76 = arith.truncf %75 : vector<8x8xf32> to vector<8x8xbf16>
    %c2_51 = arith.constant 2 : index
    %c0_52 = arith.constant 0 : index
    %c0_53 = arith.constant 0 : index
    %c0_54 = arith.constant 0 : index
    %77 = vector.load %arg12[%c2_51, %c0_52, %c0_53, %c0_54] : memref<4x1x8x8xbf16, #tpu.memory_space<vmem>>, vector<1x1x8x8xbf16>
    %78 = vector.shape_cast %77 : vector<1x1x8x8xbf16> to vector<8x8xbf16>
    %79 = vector.shape_cast %76 : vector<8x8xbf16> to vector<1x1x8x8xbf16>
    tpu.vector_store %arg12[%c2_51, %c0_52, %c0_53, %c0_54], %79 {strides = array<i32>} : memref<4x1x8x8xbf16, #tpu.memory_space<vmem>>, vector<1x1x8x8xbf16>,
    %80 = vector.extract_strided_slice %39 {offsets = [0, 16], sizes = [8, 8], strides = [1, 1]} : vector<8x32xf32> to vector<8x8xf32>
    %81 = arith.truncf %80 : vector<8x8xf32> to vector<8x8xbf16>
    %c2_55 = arith.constant 2 : index
    %c0_56 = arith.constant 0 : index
    %c0_57 = arith.constant 0 : index
    %c0_58 = arith.constant 0 : index
    %82 = vector.load %arg13[%c2_55, %c0_56, %c0_57, %c0_58] : memref<4x1x8x8xbf16, #tpu.memory_space<vmem>>, vector<1x1x8x8xbf16>
    %83 = vector.shape_cast %82 : vector<1x1x8x8xbf16> to vector<8x8xbf16>
    %84 = vector.shape_cast %81 : vector<8x8xbf16> to vector<1x1x8x8xbf16>
    tpu.vector_store %arg13[%c2_55, %c0_56, %c0_57, %c0_58], %84 {strides = array<i32>} : memref<4x1x8x8xbf16, #tpu.memory_space<vmem>>, vector<1x1x8x8xbf16>,
    %85 = vector.extract_strided_slice %29 {offsets = [0, 24], sizes = [8, 8], strides = [1, 1]} : vector<8x32xf32> to vector<8x8xf32>
    %86 = arith.truncf %85 : vector<8x8xf32> to vector<8x8xbf16>
    %c3 = arith.constant 3 : index
    %c0_59 = arith.constant 0 : index
    %c0_60 = arith.constant 0 : index
    %c0_61 = arith.constant 0 : index
    %87 = vector.load %arg11[%c3, %c0_59, %c0_60, %c0_61] : memref<4x1x8x8xbf16, #tpu.memory_space<vmem>>, vector<1x1x8x8xbf16>
    %88 = vector.shape_cast %87 : vector<1x1x8x8xbf16> to vector<8x8xbf16>
    %89 = vector.shape_cast %86 : vector<8x8xbf16> to vector<1x1x8x8xbf16>
    tpu.vector_store %arg11[%c3, %c0_59, %c0_60, %c0_61], %89 {strides = array<i32>} : memref<4x1x8x8xbf16, #tpu.memory_space<vmem>>, vector<1x1x8x8xbf16>,
    %90 = vector.extract_strided_slice %34 {offsets = [0, 24], sizes = [8, 8], strides = [1, 1]} : vector<8x32xf32> to vector<8x8xf32>
    %91 = arith.truncf %90 : vector<8x8xf32> to vector<8x8xbf16>
    %c3_62 = arith.constant 3 : index
    %c0_63 = arith.constant 0 : index
    %c0_64 = arith.constant 0 : index
    %c0_65 = arith.constant 0 : index
    %92 = vector.load %arg12[%c3_62, %c0_63, %c0_64, %c0_65] : memref<4x1x8x8xbf16, #tpu.memory_space<vmem>>, vector<1x1x8x8xbf16>
    %93 = vector.shape_cast %92 : vector<1x1x8x8xbf16> to vector<8x8xbf16>
    %94 = vector.shape_cast %91 : vector<8x8xbf16> to vector<1x1x8x8xbf16>
    tpu.vector_store %arg12[%c3_62, %c0_63, %c0_64, %c0_65], %94 {strides = array<i32>} : memref<4x1x8x8xbf16, #tpu.memory_space<vmem>>, vector<1x1x8x8xbf16>,
    %95 = vector.extract_strided_slice %39 {offsets = [0, 24], sizes = [8, 8], strides = [1, 1]} : vector<8x32xf32> to vector<8x8xf32>
    %96 = arith.truncf %95 : vector<8x8xf32> to vector<8x8xbf16>
    %c3_66 = arith.constant 3 : index
    %c0_67 = arith.constant 0 : index
    %c0_68 = arith.constant 0 : index
    %c0_69 = arith.constant 0 : index
    %97 = vector.load %arg13[%c3_66, %c0_67, %c0_68, %c0_69] : memref<4x1x8x8xbf16, #tpu.memory_space<vmem>>, vector<1x1x8x8xbf16>
    %98 = vector.shape_cast %97 : vector<1x1x8x8xbf16> to vector<8x8xbf16>
    %99 = vector.shape_cast %96 : vector<8x8xbf16> to vector<1x1x8x8xbf16>
    tpu.vector_store %arg13[%c3_66, %c0_67, %c0_68, %c0_69], %99 {strides = array<i32>} : memref<4x1x8x8xbf16, #tpu.memory_space<vmem>>, vector<1x1x8x8xbf16>,
    return
  }
  func.func @transform_0(%arg0: i32, %arg1: i32) -> (i32, i32, i32) {
    %c0_i32 = arith.constant 0 : i32
    %c0_i32_0 = arith.constant 0 : i32
    return %arg0, %arg1, %c0_i32 : i32, i32, i32
  }
  func.func @transform_1(%arg0: i32, %arg1: i32) -> (i32, i32) {
    %c0_i32 = arith.constant 0 : i32
    %c0_i32_0 = arith.constant 0 : i32
    %c0_i32_1 = arith.constant 0 : i32
    return %c0_i32, %c0_i32_0 : i32, i32
  }
  func.func @transform_2(%arg0: i32, %arg1: i32) -> (i32, i32) {
    %c0_i32 = arith.constant 0 : i32
    %c0_i32_0 = arith.constant 0 : i32
    %c0_i32_1 = arith.constant 0 : i32
    return %c0_i32, %c0_i32_0 : i32, i32
  }
  func.func @transform_3(%arg0: i32, %arg1: i32) -> (i32, i32) {
    %c0_i32 = arith.constant 0 : i32
    %c0_i32_0 = arith.constant 0 : i32
    %c0_i32_1 = arith.constant 0 : i32
    return %c0_i32, %c0_i32_0 : i32, i32
  }
  func.func @transform_4(%arg0: i32, %arg1: i32) -> (i32, i32) {
    %c0_i32 = arith.constant 0 : i32
    %c0_i32_0 = arith.constant 0 : i32
    %c0_i32_1 = arith.constant 0 : i32
    return %c0_i32, %c0_i32_0 : i32, i32
  }
  func.func @transform_5(%arg0: i32, %arg1: i32) -> (i32, i32) {
    %c0_i32 = arith.constant 0 : i32
    %c0_i32_0 = arith.constant 0 : i32
    %c0_i32_1 = arith.constant 0 : i32
    return %c0_i32, %c0_i32_0 : i32, i32
  }
  func.func @transform_6(%arg0: i32, %arg1: i32) -> (i32, i32) {
    %c0_i32 = arith.constant 0 : i32
    %c0_i32_0 = arith.constant 0 : i32
    %c0_i32_1 = arith.constant 0 : i32
    return %c0_i32, %c0_i32_0 : i32, i32
  }
  func.func @transform_7(%arg0: i32, %arg1: i32) -> (i32, i32) {
    %c0_i32 = arith.constant 0 : i32
    %c0_i32_0 = arith.constant 0 : i32
    %c0_i32_1 = arith.constant 0 : i32
    return %c0_i32, %c0_i32_0 : i32, i32
  }
  func.func @transform_8(%arg0: i32, %arg1: i32) -> (i32, i32) {
    %c0_i32 = arith.constant 0 : i32
    %c0_i32_0 = arith.constant 0 : i32
    %c0_i32_1 = arith.constant 0 : i32
    return %c0_i32, %c0_i32_0 : i32, i32
  }
  func.func @transform_9(%arg0: i32, %arg1: i32) -> (i32, i32, i32, i32) {
    %c0_i32 = arith.constant 0 : i32
    %c0_i32_0 = arith.constant 0 : i32
    %c0_i32_1 = arith.constant 0 : i32
    return %c0_i32, %arg0, %arg1, %c0_i32_0 : i32, i32, i32, i32
  }
  func.func @transform_10(%arg0: i32, %arg1: i32) -> (i32, i32, i32, i32) {
    %c0_i32 = arith.constant 0 : i32
    %c0_i32_0 = arith.constant 0 : i32
    %c0_i32_1 = arith.constant 0 : i32
    return %c0_i32, %arg0, %arg1, %c0_i32_0 : i32, i32, i32, i32
  }
  func.func @transform_11(%arg0: i32, %arg1: i32) -> (i32, i32, i32, i32) {
    %c0_i32 = arith.constant 0 : i32
    %c0_i32_0 = arith.constant 0 : i32
    %c0_i32_1 = arith.constant 0 : i32
    return %c0_i32, %arg0, %arg1, %c0_i32_0 : i32, i32, i32, i32
  }
}

</mosaic_0001>

<llo_original>
// kernel: tpu_custom_call.1
$region0: #{tpu_custom_call.1}
  #allocation0 [shape = 'u32[]', space=smem, size = 0x4, offset = 0x4, fixed_abs, tag = 'smem constant byte address 0x4 - core index']
  #allocation1 [shape = 'u32[144,128]{1,0:T(1,128)}', space=vmem, size = 0x12000, scoped, tag = 'internal scratch']
  %s0 = inlined_call_operand.hbm [shape: f32[2,8,32], index: 0, kind: input, shape index: {}]
  %s1 = inlined_call_operand.hbm [shape: f32[1,32], index: 1, kind: input, shape index: {}]
  %s2 = inlined_call_operand.hbm [shape: f32[1,32], index: 2, kind: input, shape index: {}]
  %s3 = inlined_call_operand.hbm [shape: bf16[32,32], index: 3, kind: input, shape index: {}]
  %s4 = inlined_call_operand.hbm [shape: bf16[32,32], index: 4, kind: input, shape index: {}]
  %s5 = inlined_call_operand.hbm [shape: bf16[32,32], index: 5, kind: input, shape index: {}]
  %s6 = inlined_call_operand.hbm [shape: f32[1,32], index: 6, kind: input, shape index: {}]
  %s7 = inlined_call_operand.hbm [shape: f32[1,32], index: 7, kind: input, shape index: {}]
  %s8 = inlined_call_operand.hbm [shape: f32[1,32], index: 8, kind: input, shape index: {}]
  %s9 = inlined_call_operand.hbm [shape: bf16[4,2,8,8], index: 9, kind: output, shape index: {0}]
  %s10 = inlined_call_operand.hbm [shape: bf16[4,2,8,8], index: 10, kind: output, shape index: {1}]
  %s11 = inlined_call_operand.hbm [shape: bf16[4,2,8,8], index: 11, kind: output, shape index: {2}]
  %12 = xla_tuple %s9, %s10, %s11
  %s13 = sld [smem:[#allocation0]]
  $region121: #{tpu_custom_call.1} parent=0
    _
  %s15 = ssub.s32 1, %s13
  %s16 = scalar_select 0, %s15, %s13
  $region1: #{tpu_custom_call.1} parent=0
    #allocation2 [shape = 'u8[8192]{0}', space=vmem, size = 0x2000, scoped, tag = 'input window, operand 0']
    #allocation3 [shape = 's32[2]{0}', space=sflag, size = 0x8, scoped, tag = 'scoped memory for tpu_custom_call.1']
    #allocation4 [shape = 's32[2]{0}', space=sflag, size = 0x8, scoped, tag = 'scoped memory for tpu_custom_call.1']
    #allocation5 [shape = 'u8[512]{0}', space=vmem, size = 0x400, scoped, tag = 'input window, operand 1, single buffered']
    #allocation6 [shape = 's32[1]{0}', space=sflag, size = 0x4, scoped, tag = 'scoped memory for tpu_custom_call.1']
    #allocation7 [shape = 'u8[512]{0}', space=vmem, size = 0x400, scoped, tag = 'input window, operand 2, single buffered']
    #allocation8 [shape = 'u8[8192]{0}', space=vmem, size = 0x2000, scoped, tag = 'input window, operand 3, single buffered']
    #allocation9 [shape = 's32[1]{0}', space=sflag, size = 0x4, scoped, tag = 'scoped memory for tpu_custom_call.1']
    #allocation10 [shape = 'u8[8192]{0}', space=vmem, size = 0x2000, scoped, tag = 'input window, operand 4, single buffered']
    #allocation11 [shape = 'u8[8192]{0}', space=vmem, size = 0x2000, scoped, tag = 'input window, operand 5, single buffered']
    #allocation12 [shape = 's32[1]{0}', space=sflag, size = 0x4, scoped, tag = 'scoped memory for tpu_custom_call.1']
    #allocation13 [shape = 'u8[512]{0}', space=vmem, size = 0x400, scoped, tag = 'input window, operand 6, single buffered']
    #allocation14 [shape = 'u8[512]{0}', space=vmem, size = 0x400, scoped, tag = 'input window, operand 7, single buffered']
    #allocation15 [shape = 's32[1]{0}', space=sflag, size = 0x4, scoped, tag = 'scoped memory for tpu_custom_call.1']
    #allocation16 [shape = 'u8[512]{0}', space=vmem, size = 0x400, scoped, tag = 'input window, operand 8, single buffered']
    #allocation17 [shape = 'u8[16384]{0}', space=vmem, size = 0x4000, scoped, tag = 'output window, operand 0']
    #allocation18 [shape = 'u8[16384]{0}', space=vmem, size = 0x4000, scoped, tag = 'output window, operand 1']
    #allocation19 [shape = 's32[2]{0}', space=sflag, size = 0x8, scoped, tag = 'scoped memory for tpu_custom_call.1']
    #allocation20 [shape = 'u8[16384]{0}', space=vmem, size = 0x4000, scoped, tag = 'output window, operand 2']
    %17 = vsyncpa [#allocation3], 0
    %s18 = scalar_lea.sflag [#allocation3], 1
    %19 = vsyncpa %s18, 0
    %20 = vsyncpa [#allocation6], 0
    %21 = vsyncpa [#allocation9], 0
    %22 = vsyncpa [#allocation12], 0
    %23 = vsyncpa [#allocation15], 0
    %24 = vsyncpa [#allocation4], 0
    %s25 = scalar_lea.sflag [#allocation4], 1
    %26 = vsyncpa %s25, 0
    %27 = vsyncpa [#allocation19], 0
    %s28 = scalar_lea.sflag [#allocation19], 1
    %29 = vsyncpa %s28, 0
    loop: start=0, step=1, limit=4
    $region2: #{tpu_custom_call.1} parent=1 // loop_pre_header
      _
    $region3: #{tpu_custom_call.1} parent=1 // loop_header
      %s31 = sphi 0, %s35
      %p32 = scmp.ge.s32.totalorder %s31, 4
      %s38 = sphi 0, %s50
      %s39 = sphi 0, %s46
      %s40 = sphi 0, %s38
      %s41 = sphi 0, %s39
      %s42 = sphi 0, %s40
      %s43 = sphi 0, %s41
      %s55 = sphi 0, %s57
      %s58 = sphi 0, %s55
      %s59 = sphi 0, %s58
      %s75 = sphi 0, %s59
      %s79 = sphi 0, %s79
      %s81 = sphi 0, %s79
      %s82 = sphi 0, %s81
      %s96 = sphi 0, %s82
      %s100 = sphi 0, %s100
      %s102 = sphi 0, %s100
      %s103 = sphi 0, %s102
      %s117 = sphi 0, %s103
      %s121 = sphi 0, %s121
      %s123 = sphi 0, %s121
      %s124 = sphi 0, %s123
      %s138 = sphi 0, %s124
      %s142 = sphi 0, %s142
      %s144 = sphi 0, %s142
      %s145 = sphi 0, %s144
      %s159 = sphi 0, %s145
      %s163 = sphi 0, %s163
      %s165 = sphi 0, %s163
      %s166 = sphi 0, %s165
      %s180 = sphi 0, %s166
      %s184 = sphi 0, %s184
      %s186 = sphi 0, %s184
      %s187 = sphi 0, %s186
      %s201 = sphi 0, %s187
      %s205 = sphi 0, %s205
      %s207 = sphi 0, %s205
      %s208 = sphi 0, %s207
      %s222 = sphi 0, %s208
      %s226 = sphi 0, %s226
      %s228 = sphi 0, %s226
      %s229 = sphi 0, %s228
      %s243 = sphi 0, %s229
      %s251 = sphi 0, %s253
      %s254 = sphi 0, %s251
      %s255 = sphi 0, %s254
      %s271 = sphi 0, %s255
      %s279 = sphi 0, %s281
      %s282 = sphi 0, %s279
      %s283 = sphi 0, %s282
      %s299 = sphi 0, %s283
      %s307 = sphi 0, %s309
      %s310 = sphi 0, %s307
      %s311 = sphi 0, %s310
      %s327 = sphi 0, %s311
    $region4: #{tpu_custom_call.1} parent=1 // loop_header_branch
      %34 = sbr.rel (%p32) target = $region8
    $region5: #{tpu_custom_call.1} parent=1 // loop_body
      %s36 = ssub.s32 %s31, 1
      %s37 = ssub.s32 %s31, 2
      %s44 = sadd.s32 1, %s39
      %p45 = scmp.ge.s32.totalorder %s44, 1
      %s46 = scalar_select %p45, 0, %s44
      %s47 = sadd.s32 1, %s38
      %s48 = scalar_select %p45, %s47, %s38
      %p49 = scmp.ge.s32.totalorder %s48, 2
      %s50 = scalar_select %p49, 0, %s48
      %s51 = ssub.s32 %s38, %s50
      %s52 = ssub.s32 %s39, %s46
      %s53 = sor.u32 %s51, %s52
      %p54 = scmp.eq.s32.totalorder %s53, 0
      %s56 = sadd.s32 %s55, 1
      %s57 = scalar_select %p54, %s55, %s56
      %p60 = pneg %p54
      %p61 = scmp.eq.s32.totalorder %s31, 1
      %p62 = por %p60, %p61
      %p63 = scmp.ne.s32.totalorder %s55, %s58
      %p64 = scmp.eq.s32.totalorder %s31, 0
      %p65 = por %p63, %p64
      %p66 = scmp.ne.s32.totalorder %s55, %s58
      %p67 = scmp.eq.s32.totalorder %s36, 1
      %p68 = por %p66, %p67
      %p69 = scmp.ne.s32.totalorder %s58, %s59
      %p70 = scmp.eq.s32.totalorder %s36, 0
      %p71 = por %p69, %p70
      %p72 = scmp.ne.s32.totalorder %s58, %s59
      %p73 = scmp.eq.s32.totalorder %s37, 1
      %p74 = por %p72, %p73
      %p76 = scmp.ne.s32.totalorder %s59, %s75
      %p77 = scmp.eq.s32.totalorder %s37, 0
      %p78 = por %p76, %p77
      %s80 = sadd.s32 %s79, 1
      %p83 = scmp.eq.s32.totalorder %s31, 1
      %p84 = scmp.ne.s32.totalorder %s79, %s81
      %p85 = scmp.eq.s32.totalorder %s31, 0
      %p86 = por %p84, %p85
      %p87 = scmp.ne.s32.totalorder %s79, %s81
      %p88 = scmp.eq.s32.totalorder %s36, 1
      %p89 = por %p87, %p88
      %p90 = scmp.ne.s32.totalorder %s81, %s82
      %p91 = scmp.eq.s32.totalorder %s36, 0
      %p92 = por %p90, %p91
      %p93 = scmp.ne.s32.totalorder %s81, %s82
      %p94 = scmp.eq.s32.totalorder %s37, 1
      %p95 = por %p93, %p94
      %p97 = scmp.ne.s32.totalorder %s82, %s96
      %p98 = scmp.eq.s32.totalorder %s37, 0
      %p99 = por %p97, %p98
      %s101 = sadd.s32 %s100, 1
      %p104 = scmp.eq.s32.totalorder %s31, 1
      %p105 = scmp.ne.s32.totalorder %s100, %s102
      %p106 = scmp.eq.s32.totalorder %s31, 0
      %p107 = por %p105, %p106
      %p108 = scmp.ne.s32.totalorder %s100, %s102
      %p109 = scmp.eq.s32.totalorder %s36, 1
      %p110 = por %p108, %p109
      %p111 = scmp.ne.s32.totalorder %s102, %s103
      %p112 = scmp.eq.s32.totalorder %s36, 0
      %p113 = por %p111, %p112
      %p114 = scmp.ne.s32.totalorder %s102, %s103
      %p115 = scmp.eq.s32.totalorder %s37, 1
      %p116 = por %p114, %p115
      %p118 = scmp.ne.s32.totalorder %s103, %s117
      %p119 = scmp.eq.s32.totalorder %s37, 0
      %p120 = por %p118, %p119
      %s122 = sadd.s32 %s121, 1
      %p125 = scmp.eq.s32.totalorder %s31, 1
      %p126 = scmp.ne.s32.totalorder %s121, %s123
      %p127 = scmp.eq.s32.totalorder %s31, 0
      %p128 = por %p126, %p127
      %p129 = scmp.ne.s32.totalorder %s121, %s123
      %p130 = scmp.eq.s32.totalorder %s36, 1
      %p131 = por %p129, %p130
      %p132 = scmp.ne.s32.totalorder %s123, %s124
      %p133 = scmp.eq.s32.totalorder %s36, 0
      %p134 = por %p132, %p133
      %p135 = scmp.ne.s32.totalorder %s123, %s124
      %p136 = scmp.eq.s32.totalorder %s37, 1
      %p137 = por %p135, %p136
      %p139 = scmp.ne.s32.totalorder %s124, %s138
      %p140 = scmp.eq.s32.totalorder %s37, 0
      %p141 = por %p139, %p140
      %s143 = sadd.s32 %s142, 1
      %p146 = scmp.eq.s32.totalorder %s31, 1
      %p147 = scmp.ne.s32.totalorder %s142, %s144
      %p148 = scmp.eq.s32.totalorder %s31, 0
      %p149 = por %p147, %p148
      %p150 = scmp.ne.s32.totalorder %s142, %s144
      %p151 = scmp.eq.s32.totalorder %s36, 1
      %p152 = por %p150, %p151
      %p153 = scmp.ne.s32.totalorder %s144, %s145
      %p154 = scmp.eq.s32.totalorder %s36, 0
      %p155 = por %p153, %p154
      %p156 = scmp.ne.s32.totalorder %s144, %s145
      %p157 = scmp.eq.s32.totalorder %s37, 1
      %p158 = por %p156, %p157
      %p160 = scmp.ne.s32.totalorder %s145, %s159
      %p161 = scmp.eq.s32.totalorder %s37, 0
      %p162 = por %p160, %p161
      %s164 = sadd.s32 %s163, 1
      %p167 = scmp.eq.s32.totalorder %s31, 1
      %p168 = scmp.ne.s32.totalorder %s163, %s165
      %p169 = scmp.eq.s32.totalorder %s31, 0
      %p170 = por %p168, %p169
      %p171 = scmp.ne.s32.totalorder %s163, %s165
      %p172 = scmp.eq.s32.totalorder %s36, 1
      %p173 = por %p171, %p172
      %p174 = scmp.ne.s32.totalorder %s165, %s166
      %p175 = scmp.eq.s32.totalorder %s36, 0
      %p176 = por %p174, %p175
      %p177 = scmp.ne.s32.totalorder %s165, %s166
      %p178 = scmp.eq.s32.totalorder %s37, 1
      %p179 = por %p177, %p178
      %p181 = scmp.ne.s32.totalorder %s166, %s180
      %p182 = scmp.eq.s32.totalorder %s37, 0
      %p183 = por %p181, %p182
      %s185 = sadd.s32 %s184, 1
      %p188 = scmp.eq.s32.totalorder %s31, 1
      %p189 = scmp.ne.s32.totalorder %s184, %s186
      %p190 = scmp.eq.s32.totalorder %s31, 0
      %p191 = por %p189, %p190
      %p192 = scmp.ne.s32.totalorder %s184, %s186
      %p193 = scmp.eq.s32.totalorder %s36, 1
      %p194 = por %p192, %p193
      %p195 = scmp.ne.s32.totalorder %s186, %s187
      %p196 = scmp.eq.s32.totalorder %s36, 0
      %p197 = por %p195, %p196
      %p198 = scmp.ne.s32.totalorder %s186, %s187
      %p199 = scmp.eq.s32.totalorder %s37, 1
      %p200 = por %p198, %p199
      %p202 = scmp.ne.s32.totalorder %s187, %s201
      %p203 = scmp.eq.s32.totalorder %s37, 0
      %p204 = por %p202, %p203
      %s206 = sadd.s32 %s205, 1
      %p209 = scmp.eq.s32.totalorder %s31, 1
      %p210 = scmp.ne.s32.totalorder %s205, %s207
      %p211 = scmp.eq.s32.totalorder %s31, 0
      %p212 = por %p210, %p211
      %p213 = scmp.ne.s32.totalorder %s205, %s207
      %p214 = scmp.eq.s32.totalorder %s36, 1
      %p215 = por %p213, %p214
      %p216 = scmp.ne.s32.totalorder %s207, %s208
      %p217 = scmp.eq.s32.totalorder %s36, 0
      %p218 = por %p216, %p217
      %p219 = scmp.ne.s32.totalorder %s207, %s208
      %p220 = scmp.eq.s32.totalorder %s37, 1
      %p221 = por %p219, %p220
      %p223 = scmp.ne.s32.totalorder %s208, %s222
      %p224 = scmp.eq.s32.totalorder %s37, 0
      %p225 = por %p223, %p224
      %s227 = sadd.s32 %s226, 1
      %p230 = scmp.eq.s32.totalorder %s31, 1
      %p231 = scmp.ne.s32.totalorder %s226, %s228
      %p232 = scmp.eq.s32.totalorder %s31, 0
      %p233 = por %p231, %p232
      %p234 = scmp.ne.s32.totalorder %s226, %s228
      %p235 = scmp.eq.s32.totalorder %s36, 1
      %p236 = por %p234, %p235
      %p237 = scmp.ne.s32.totalorder %s228, %s229
      %p238 = scmp.eq.s32.totalorder %s36, 0
      %p239 = por %p237, %p238
      %p240 = scmp.ne.s32.totalorder %s228, %s229
      %p241 = scmp.eq.s32.totalorder %s37, 1
      %p242 = por %p240, %p241
      %p244 = scmp.ne.s32.totalorder %s229, %s243
      %p245 = scmp.eq.s32.totalorder %s37, 0
      %p246 = por %p244, %p245
      %s247 = ssub.s32 %s38, %s50
      %s248 = ssub.s32 %s39, %s46
      %s249 = sor.u32 %s247, %s248
      %p250 = scmp.eq.s32.totalorder %s249, 0
      %s252 = sadd.s32 %s251, 1
      %s253 = scalar_select %p250, %s251, %s252
      %p256 = pneg %p250
      %p257 = scmp.eq.s32.totalorder %s31, 1
      %p258 = por %p256, %p257
      %p259 = scmp.ne.s32.totalorder %s251, %s254
      %p260 = scmp.eq.s32.totalorder %s31, 0
      %p261 = por %p259, %p260
      %p262 = scmp.ne.s32.totalorder %s251, %s254
      %p263 = scmp.eq.s32.totalorder %s36, 1
      %p264 = por %p262, %p263
      %p265 = scmp.ne.s32.totalorder %s254, %s255
      %p266 = scmp.eq.s32.totalorder %s36, 0
      %p267 = por %p265, %p266
      %p268 = scmp.ne.s32.totalorder %s254, %s255
      %p269 = scmp.eq.s32.totalorder %s37, 1
      %p270 = por %p268, %p269
      %p272 = scmp.ne.s32.totalorder %s255, %s271
      %p273 = scmp.eq.s32.totalorder %s37, 0
      %p274 = por %p272, %p273
      %s275 = ssub.s32 %s38, %s50
      %s276 = ssub.s32 %s39, %s46
      %s277 = sor.u32 %s275, %s276
      %p278 = scmp.eq.s32.totalorder %s277, 0
      %s280 = sadd.s32 %s279, 1
      %s281 = scalar_select %p278, %s279, %s280
      %p284 = pneg %p278
      %p285 = scmp.eq.s32.totalorder %s31, 1
      %p286 = por %p284, %p285
      %p287 = scmp.ne.s32.totalorder %s279, %s282
      %p288 = scmp.eq.s32.totalorder %s31, 0
      %p289 = por %p287, %p288
      %p290 = scmp.ne.s32.totalorder %s279, %s282
      %p291 = scmp.eq.s32.totalorder %s36, 1
      %p292 = por %p290, %p291
      %p293 = scmp.ne.s32.totalorder %s282, %s283
      %p294 = scmp.eq.s32.totalorder %s36, 0
      %p295 = por %p293, %p294
      %p296 = scmp.ne.s32.totalorder %s282, %s283
      %p297 = scmp.eq.s32.totalorder %s37, 1
      %p298 = por %p296, %p297
      %p300 = scmp.ne.s32.totalorder %s283, %s299
      %p301 = scmp.eq.s32.totalorder %s37, 0
      %p302 = por %p300, %p301
      %s303 = ssub.s32 %s38, %s50
      %s304 = ssub.s32 %s39, %s46
      %s305 = sor.u32 %s303, %s304
      %p306 = scmp.eq.s32.totalorder %s305, 0
      %s308 = sadd.s32 %s307, 1
      %s309 = scalar_select %p306, %s307, %s308
      %p312 = pneg %p306
      %p313 = scmp.eq.s32.totalorder %s31, 1
      %p314 = por %p312, %p313
      %p315 = scmp.ne.s32.totalorder %s307, %s310
      %p316 = scmp.eq.s32.totalorder %s31, 0
      %p317 = por %p315, %p316
      %p318 = scmp.ne.s32.totalorder %s307, %s310
      %p319 = scmp.eq.s32.totalorder %s36, 1
      %p320 = por %p318, %p319
      %p321 = scmp.ne.s32.totalorder %s310, %s311
      %p322 = scmp.eq.s32.totalorder %s36, 0
      %p323 = por %p321, %p322
      %p324 = scmp.ne.s32.totalorder %s310, %s311
      %p325 = scmp.eq.s32.totalorder %s37, 1
      %p326 = por %p324, %p325
      %p328 = scmp.ne.s32.totalorder %s311, %s327
      %p329 = scmp.eq.s32.totalorder %s37, 0
      %p330 = por %p328, %p329
      %p331 = scmp.le.s32.totalorder 1, %s31
      %p332 = scmp.lt.s32.totalorder %s31, 3
      %p333 = pnand %p331, %p332
      %p334 = pneg %p333
      // Predicated region
      $region9: #{tpu_custom_call.1} parent=5 // pred_check
        _
      $region10: #{tpu_custom_call.1} parent=5 // pred_check_branch
        %336 = sbr.rel (%p333) target = $region12
      $region11: #{tpu_custom_call.1} parent=5 // pred_region
        %s337 = ssub.s32 %s31, 1
        // Predicated region
        $region13: #{tpu_custom_call.1} parent=11 // pred_check
          %p338 = pneg %p92
        $region14: #{tpu_custom_call.1} parent=11 // pred_check_branch
          %340 = sbr.rel (%p338) target = $region16
        $region15: #{tpu_custom_call.1} parent=11 // pred_region
          %s342 = ssub.s32 16, 16
          %343 = vsyncadd [#allocation6], %s342
          %s345 = sshll.u32 [#allocation5], 4
          %s346 = int_to_ptr.vmem [resolvable:$true] %s345
          %348 = dma.hbm_to_vmem [thread:$0]  %s1, 16, %s346, [#allocation6]
        $region16: #{tpu_custom_call.1} parent=11 // pred_fallthru
          _
        // Predicated region
        $region17: #{tpu_custom_call.1} parent=11 // pred_check
          %p349 = pneg %p113
        $region18: #{tpu_custom_call.1} parent=11 // pred_check_branch
          %351 = sbr.rel (%p349) target = $region20
        $region19: #{tpu_custom_call.1} parent=11 // pred_region
          %s353 = ssub.s32 16, 16
          %354 = vsyncadd [#allocation6], %s353
          %s356 = sshll.u32 [#allocation7], 4
          %s357 = int_to_ptr.vmem [resolvable:$true] %s356
          %359 = dma.hbm_to_vmem [thread:$0]  %s2, 16, %s357, [#allocation6]
        $region20: #{tpu_custom_call.1} parent=11 // pred_fallthru
          _
        // Predicated region
        $region21: #{tpu_custom_call.1} parent=11 // pred_check
          %p360 = pneg %p134
        $region22: #{tpu_custom_call.1} parent=11 // pred_check_branch
          %362 = sbr.rel (%p360) target = $region24
        $region23: #{tpu_custom_call.1} parent=11 // pred_region
          %s364 = ssub.s32 256, 256
          %365 = vsyncadd [#allocation9], %s364
          %s366 = sshll.u32 [#allocation8], 4
          %s367 = int_to_ptr.vmem [resolvable:$true] %s366
          %372 = dma.hbm_to_vmem [thread:$0]  %s3, 256, %s367, [#allocation9], 64, 64, 4
        $region24: #{tpu_custom_call.1} parent=11 // pred_fallthru
          _
        // Predicated region
        $region25: #{tpu_custom_call.1} parent=11 // pred_check
          %p373 = pneg %p155
        $region26: #{tpu_custom_call.1} parent=11 // pred_check_branch
          %375 = sbr.rel (%p373) target = $region28
        $region27: #{tpu_custom_call.1} parent=11 // pred_region
          %s377 = ssub.s32 256, 256
          %378 = vsyncadd [#allocation9], %s377
          %s379 = sshll.u32 [#allocation10], 4
          %s380 = int_to_ptr.vmem [resolvable:$true] %s379
          %385 = dma.hbm_to_vmem [thread:$0]  %s4, 256, %s380, [#allocation9], 64, 64, 4
        $region28: #{tpu_custom_call.1} parent=11 // pred_fallthru
          _
        // Predicated region
        $region29: #{tpu_custom_call.1} parent=11 // pred_check
          %p386 = pneg %p176
        $region30: #{tpu_custom_call.1} parent=11 // pred_check_branch
          %388 = sbr.rel (%p386) target = $region32
        $region31: #{tpu_custom_call.1} parent=11 // pred_region
          %s390 = ssub.s32 256, 256
          %391 = vsyncadd [#allocation12], %s390
          %s392 = sshll.u32 [#allocation11], 4
          %s393 = int_to_ptr.vmem [resolvable:$true] %s392
          %398 = dma.hbm_to_vmem [thread:$0]  %s5, 256, %s393, [#allocation12], 64, 64, 4
        $region32: #{tpu_custom_call.1} parent=11 // pred_fallthru
          _
        // Predicated region
        $region33: #{tpu_custom_call.1} parent=11 // pred_check
          %p399 = pneg %p197
        $region34: #{tpu_custom_call.1} parent=11 // pred_check_branch
          %401 = sbr.rel (%p399) target = $region36
        $region35: #{tpu_custom_call.1} parent=11 // pred_region
          %s403 = ssub.s32 16, 16
          %404 = vsyncadd [#allocation12], %s403
          %s406 = sshll.u32 [#allocation13], 4
          %s407 = int_to_ptr.vmem [resolvable:$true] %s406
          %409 = dma.hbm_to_vmem [thread:$0]  %s6, 16, %s407, [#allocation12]
        $region36: #{tpu_custom_call.1} parent=11 // pred_fallthru
          _
        // Predicated region
        $region37: #{tpu_custom_call.1} parent=11 // pred_check
          %p410 = pneg %p218
        $region38: #{tpu_custom_call.1} parent=11 // pred_check_branch
          %412 = sbr.rel (%p410) target = $region40
        $region39: #{tpu_custom_call.1} parent=11 // pred_region
          %s414 = ssub.s32 16, 16
          %415 = vsyncadd [#allocation15], %s414
          %s417 = sshll.u32 [#allocation14], 4
          %s418 = int_to_ptr.vmem [resolvable:$true] %s417
          %420 = dma.hbm_to_vmem [thread:$0]  %s7, 16, %s418, [#allocation15]
        $region40: #{tpu_custom_call.1} parent=11 // pred_fallthru
          _
        // Predicated region
        $region41: #{tpu_custom_call.1} parent=11 // pred_check
          %p421 = pneg %p239
        $region42: #{tpu_custom_call.1} parent=11 // pred_check_branch
          %423 = sbr.rel (%p421) target = $region44
        $region43: #{tpu_custom_call.1} parent=11 // pred_region
          %s425 = ssub.s32 16, 16
          %426 = vsyncadd [#allocation15], %s425
          %s428 = sshll.u32 [#allocation16], 4
          %s429 = int_to_ptr.vmem [resolvable:$true] %s428
          %431 = dma.hbm_to_vmem [thread:$0]  %s8, 16, %s429, [#allocation15]
        $region44: #{tpu_custom_call.1} parent=11 // pred_fallthru
          _
      $region12: #{tpu_custom_call.1} parent=5 // pred_fallthru
        _
      %p432 = scmp.lt.s32.totalorder %s31, 2
      // Predicated region
      $region45: #{tpu_custom_call.1} parent=5 // pred_check
        %p433 = pneg %p432
      $region46: #{tpu_custom_call.1} parent=5 // pred_check_branch
        %435 = sbr.rel (%p433) target = $region48
      $region47: #{tpu_custom_call.1} parent=5 // pred_region
        // Predicated region
        $region49: #{tpu_custom_call.1} parent=47 // pred_check
          %p436 = pneg %p65
        $region50: #{tpu_custom_call.1} parent=47 // pred_check_branch
          %438 = sbr.rel (%p436) target = $region52
        $region51: #{tpu_custom_call.1} parent=47 // pred_region
          %s439 = sand.u32 %s55, 1
          %s440 = scalar_lea.sflag [#allocation3], %s439
          %s441 = sand.u32 %s55, 1
          %s442 = smul.addr %s441, 8
          %s443 = scalar_lea.vmem [#allocation2], %s442
          %s445 = ssub.s32 128, 128
          %446 = vsyncadd %s440, %s445
          %s447 = sadd.s32 %s39, %s38
          %s448 = smul.addr %s447, 128
          %s449 = scalar_lea.hbm %s0, %s448
          %s451 = sshll.u32 %s443, 4
          %s452 = int_to_ptr.vmem [resolvable:$true] %s451
          %454 = dma.hbm_to_vmem [thread:$0]  %s449, 128, %s452, %s440
        $region52: #{tpu_custom_call.1} parent=47 // pred_fallthru
          _
      $region48: #{tpu_custom_call.1} parent=5 // pred_fallthru
        _
      %p455 = scmp.le.s32.totalorder 1, %s31
      %p456 = scmp.lt.s32.totalorder %s31, 3
      %p457 = pnand %p455, %p456
      %p458 = pneg %p457
      // Predicated region
      $region53: #{tpu_custom_call.1} parent=5 // pred_check
        _
      $region54: #{tpu_custom_call.1} parent=5 // pred_check_branch
        %460 = sbr.rel (%p457) target = $region56
      $region55: #{tpu_custom_call.1} parent=5 // pred_region
        %s461 = ssub.s32 %s31, 1
        %s462 = sand.u32 %s58, 1
        %s463 = scalar_lea.sflag [#allocation3], %s462
        %s464 = sand.u32 %s58, 1
        %s465 = smul.addr %s464, 8
        %s466 = scalar_lea.vmem [#allocation2], %s465
        // Predicated region
        $region57: #{tpu_custom_call.1} parent=55 // pred_check
          %p467 = pneg %p71
        $region58: #{tpu_custom_call.1} parent=55 // pred_check_branch
          %469 = sbr.rel (%p467) target = $region60
        $region59: #{tpu_custom_call.1} parent=55 // pred_region
          %470 = dma.done %s463, 128
        $region60: #{tpu_custom_call.1} parent=55 // pred_fallthru
          _
        // Predicated region
        $region61: #{tpu_custom_call.1} parent=55 // pred_check
          %p471 = pneg %p92
        $region62: #{tpu_custom_call.1} parent=55 // pred_check_branch
          %473 = sbr.rel (%p471) target = $region64
        $region63: #{tpu_custom_call.1} parent=55 // pred_region
          %474 = dma.done [#allocation6], 16
        $region64: #{tpu_custom_call.1} parent=55 // pred_fallthru
          _
        // Predicated region
        $region65: #{tpu_custom_call.1} parent=55 // pred_check
          %p475 = pneg %p113
        $region66: #{tpu_custom_call.1} parent=55 // pred_check_branch
          %477 = sbr.rel (%p475) target = $region68
        $region67: #{tpu_custom_call.1} parent=55 // pred_region
          %478 = dma.done [#allocation6], 16
        $region68: #{tpu_custom_call.1} parent=55 // pred_fallthru
          _
        // Predicated region
        $region69: #{tpu_custom_call.1} parent=55 // pred_check
          %p479 = pneg %p134
        $region70: #{tpu_custom_call.1} parent=55 // pred_check_branch
          %481 = sbr.rel (%p479) target = $region72
        $region71: #{tpu_custom_call.1} parent=55 // pred_region
          %482 = dma.done [#allocation9], 256
        $region72: #{tpu_custom_call.1} parent=55 // pred_fallthru
          _
        // Predicated region
        $region73: #{tpu_custom_call.1} parent=55 // pred_check
          %p483 = pneg %p155
        $region74: #{tpu_custom_call.1} parent=55 // pred_check_branch
          %485 = sbr.rel (%p483) target = $region76
        $region75: #{tpu_custom_call.1} parent=55 // pred_region
          %486 = dma.done [#allocation9], 256
        $region76: #{tpu_custom_call.1} parent=55 // pred_fallthru
          _
        // Predicated region
        $region77: #{tpu_custom_call.1} parent=55 // pred_check
          %p487 = pneg %p176
        $region78: #{tpu_custom_call.1} parent=55 // pred_check_branch
          %489 = sbr.rel (%p487) target = $region80
        $region79: #{tpu_custom_call.1} parent=55 // pred_region
          %490 = dma.done [#allocation12], 256
        $region80: #{tpu_custom_call.1} parent=55 // pred_fallthru
          _
        // Predicated region
        $region81: #{tpu_custom_call.1} parent=55 // pred_check
          %p491 = pneg %p197
        $region82: #{tpu_custom_call.1} parent=55 // pred_check_branch
          %493 = sbr.rel (%p491) target = $region84
        $region83: #{tpu_custom_call.1} parent=55 // pred_region
          %494 = dma.done [#allocation12], 16
        $region84: #{tpu_custom_call.1} parent=55 // pred_fallthru
          _
        // Predicated region
        $region85: #{tpu_custom_call.1} parent=55 // pred_check
          %p495 = pneg %p218
        $region86: #{tpu_custom_call.1} parent=55 // pred_check_branch
          %497 = sbr.rel (%p495) target = $region88
        $region87: #{tpu_custom_call.1} parent=55 // pred_region
          %498 = dma.done [#allocation15], 16
        $region88: #{tpu_custom_call.1} parent=55 // pred_fallthru
          _
        // Predicated region
        $region89: #{tpu_custom_call.1} parent=55 // pred_check
          %p499 = pneg %p239
        $region90: #{tpu_custom_call.1} parent=55 // pred_check_branch
          %501 = sbr.rel (%p499) target = $region92
        $region91: #{tpu_custom_call.1} parent=55 // pred_region
          %502 = dma.done [#allocation15], 16
        $region92: #{tpu_custom_call.1} parent=55 // pred_fallthru
          _
        %s503 = sand.u32 %s58, 1
        %s504 = scalar_lea.sflag [#allocation3], %s503
        %s505 = sand.u32 %s58, 1
        %s506 = smul.addr %s505, 8
        %s507 = scalar_lea.vmem [#allocation2], %s506
        %p508 = pneg %p71
        %p509 = pneg %p68
        %p510 = pneg %p92
        %p511 = pneg %p89
        %p512 = pneg %p113
        %p513 = pneg %p110
        %p514 = pneg %p134
        %p515 = pneg %p131
        %p516 = pneg %p155
        %p517 = pneg %p152
        %p518 = pneg %p176
        %p519 = pneg %p173
        %p520 = pneg %p197
        %p521 = pneg %p194
        %p522 = pneg %p218
        %p523 = pneg %p215
        %p524 = pneg %p239
        %p525 = pneg %p236
        %p526 = pneg %p267
        %p527 = pneg %p264
        %s528 = sand.u32 %s254, 1
        %s529 = scalar_lea.sflag [#allocation4], %s528
        %s530 = sand.u32 %s254, 1
        %s531 = smul.addr %s530, 16
        %s532 = scalar_lea.vmem [#allocation17], %s531
        %p533 = pneg %p295
        %p534 = pneg %p292
        %s535 = sand.u32 %s36, 1
        %s536 = scalar_lea.sflag [#allocation19], %s535
        %s537 = sand.u32 %s282, 1
        %s538 = smul.addr %s537, 16
        %s539 = scalar_lea.vmem [#allocation18], %s538
        %p540 = pneg %p323
        %p541 = pneg %p320
        %s542 = sand.u32 %s36, 1
        %s543 = scalar_lea.sflag [#allocation19], %s542
        %s544 = sand.u32 %s310, 1
        %s545 = smul.addr %s544, 16
        %s546 = scalar_lea.vmem [#allocation20], %s545
        %v548 = vld [vmem:[%s466] sm:$0xff]
        %v549 = vld [vmem:[#allocation5] sm:$0x1]
        %v550 = vld [vmem:[#allocation7] sm:$0x1]
        %vm551 = vcmask 261120
        %v552 = vsel %vm551, %v548, 0.0
        %553 = vadd.xlane.f32.xlu0 %v552
        %v554 = vpop.xlane.xlu0 %553
        %v555 = vrcp.pop 32.0
        %v556 = vmul.f32 %v554, %v555
        %v557 = vsub.f32 %v548, %v556
        %v558 = vmul.f32 %v557, %v557
        %v559 = vsel %vm551, %v558, 0.0
        %560 = vadd.xlane.f32.xlu0 %v559
        %v561 = vpop.xlane.xlu0 %560
        %v562 = vmul.f32 %v561, %v555
        %v563 = vadd.f32 %v562, 1e-05
        %v564 = vrsqrt.pop %v563
        %v565 = vmul.f32 %v557, %v564
        %v567 = vlaneseq
        %v568 = vshrl.u32 %v567, 7
        %v569 = vsub.s32 0, %v568
        %v570 = vrot.slane %v549, %v569
        %v572 = vmul.f32 %v565, %v570
        %v574 = vlaneseq
        %v575 = vshrl.u32 %v574, 7
        %v576 = vsub.s32 0, %v575
        %v577 = vrot.slane %v550, %v576
        %v579 = vadd.f32 %v572, %v577
        %v580 = vpack.c.bf16 %v579, %v579
        %v581 = vld [vmem:[#allocation8] sm:$0xf]
        %v582 = vld [vmem:[#allocation8 + $0x4] sm:$0xf]
        %v583 = vld [vmem:[#allocation8 + $0x8] sm:$0xf]
        %v584 = vld [vmem:[#allocation8 + $0xc] sm:$0xf]
        %v585 = vld [vmem:[#allocation13] sm:$0x1]
        %v587 = vlaneseq
        %v588 = vshrl.u32 %v587, 7
        %v589 = vsub.s32 0, %v588
        %v590 = vrot.slane %v585, %v589
        %v596 = vunpack.c.l.b16 %v581
        %v597 = vunpack.c.l.b16 %v582
        %v598 = vunpack.c.l.b16 %v583
        %v599 = vunpack.c.l.b16 %v584
        %v600 = vpack.c.b16 %v597, %v596
        %v601 = vpack.c.b16 %v599, %v598
        %v605 = vsel %vm551, %v580, 0
        %607 = vmatprep.subr.bf16.mxu0 0
        %608 = vmatpush1.bf16.msra.mxu0 %v600
        %609 = vmatprep.subr.bf16.mxu0 0
        %610 = vmatpush1.bf16.msra.mxu0 %v601
        %611 = vmatprep.subr.bf16.mxu0 0
        %612 = vmatpush1.bf16.msra.mxu0 0
        %613 = vmatprep.subr.bf16.mxu0 0
        %614 = vmatpush1.bf16.msra.mxu0 0
        %615 = vmatprep.subr.bf16.mxu0 0
        %616 = vmatpush1.bf16.msra.mxu0 0
        %617 = vmatprep.subr.bf16.mxu0 0
        %618 = vmatpush1.bf16.msra.mxu0 0
        %619 = vmatprep.subr.bf16.mxu0 0
        %620 = vmatpush1.bf16.msra.mxu0 0
        %621 = vmatprep.subr.bf16.mxu0 0
        %622 = vmatpush1.bf16.msra.mxu0 0
        %623 = vmatprep.subr.bf16.mxu0 0
        %624 = vmatpush1.bf16.msra.mxu0 0
        %625 = vmatprep.subr.bf16.mxu0 0
        %626 = vmatpush1.bf16.msra.mxu0 0
        %627 = vmatprep.subr.bf16.mxu0 0
        %628 = vmatpush1.bf16.msra.mxu0 0
        %629 = vmatprep.subr.bf16.mxu0 0
        %630 = vmatpush1.bf16.msra.mxu0 0
        %631 = vmatprep.subr.bf16.mxu0 0
        %632 = vmatpush1.bf16.msra.mxu0 0
        %633 = vmatprep.subr.bf16.mxu0 0
        %634 = vmatpush1.bf16.msra.mxu0 0
        %635 = vmatprep.subr.bf16.mxu0 0
        %636 = vmatpush1.bf16.msra.mxu0 0
        %637 = vmatprep.subr.bf16.mxu0 0
        %638 = vmatpush1.bf16.msra.mxu0 0
        %639 = vmatprep.mubr.bf16.mxu0 0
        %640 = vmatmul.mubr.bf16.gmra.mrb[0].mxu0 %v605
        %v641 = vpop.f32.mrb[0].mxu0
        %v642 = vadd.f32 %v590, %v641
        %v643 = vpop.f32.mrb[0].mxu0
        %v644 = vpop.f32.mrb[0].mxu0
        %v645 = vpop.f32.mrb[0].mxu0
        %646 = vdwg.mxu0
        %v647 = vld [vmem:[#allocation10] sm:$0xf]
        %v648 = vld [vmem:[#allocation10 + $0x4] sm:$0xf]
        %v649 = vld [vmem:[#allocation10 + $0x8] sm:$0xf]
        %v650 = vld [vmem:[#allocation10 + $0xc] sm:$0xf]
        %v651 = vld [vmem:[#allocation14] sm:$0x1]
        %v653 = vlaneseq
        %v654 = vshrl.u32 %v653, 7
        %v655 = vsub.s32 0, %v654
        %v656 = vrot.slane %v651, %v655
        %v662 = vunpack.c.l.b16 %v647
        %v663 = vunpack.c.l.b16 %v648
        %v664 = vunpack.c.l.b16 %v649
        %v665 = vunpack.c.l.b16 %v650
        %v666 = vpack.c.b16 %v663, %v662
        %v667 = vpack.c.b16 %v665, %v664
        %670 = vmatprep.subr.bf16.mxu0 0
        %671 = vmatpush1.bf16.msra.mxu0 %v666
        %672 = vmatprep.subr.bf16.mxu0 0
        %673 = vmatpush1.bf16.msra.mxu0 %v667
        %674 = vmatprep.subr.bf16.mxu0 0
        %675 = vmatpush1.bf16.msra.mxu0 0
        %676 = vmatprep.subr.bf16.mxu0 0
        %677 = vmatpush1.bf16.msra.mxu0 0
        %678 = vmatprep.subr.bf16.mxu0 0
        %679 = vmatpush1.bf16.msra.mxu0 0
        %680 = vmatprep.subr.bf16.mxu0 0
        %681 = vmatpush1.bf16.msra.mxu0 0
        %682 = vmatprep.subr.bf16.mxu0 0
        %683 = vmatpush1.bf16.msra.mxu0 0
        %684 = vmatprep.subr.bf16.mxu0 0
        %685 = vmatpush1.bf16.msra.mxu0 0
        %686 = vmatprep.subr.bf16.mxu0 0
        %687 = vmatpush1.bf16.msra.mxu0 0
        %688 = vmatprep.subr.bf16.mxu0 0
        %689 = vmatpush1.bf16.msra.mxu0 0
        %690 = vmatprep.subr.bf16.mxu0 0
        %691 = vmatpush1.bf16.msra.mxu0 0
        %692 = vmatprep.subr.bf16.mxu0 0
        %693 = vmatpush1.bf16.msra.mxu0 0
        %694 = vmatprep.subr.bf16.mxu0 0
        %695 = vmatpush1.bf16.msra.mxu0 0
        %696 = vmatprep.subr.bf16.mxu0 0
        %697 = vmatpush1.bf16.msra.mxu0 0
        %698 = vmatprep.subr.bf16.mxu0 0
        %699 = vmatpush1.bf16.msra.mxu0 0
        %700 = vmatprep.subr.bf16.mxu0 0
        %701 = vmatpush1.bf16.msra.mxu0 0
        %702 = vmatprep.mubr.bf16.mxu0 0
        %703 = vmatmul.mubr.bf16.gmra.mrb[0].mxu0 %v605
        %v704 = vpop.f32.mrb[0].mxu0
        %v705 = vadd.f32 %v656, %v704
        %v706 = vpop.f32.mrb[0].mxu0
        %v707 = vpop.f32.mrb[0].mxu0
        %v708 = vpop.f32.mrb[0].mxu0
        %709 = vdwg.mxu0
        %v710 = vld [vmem:[#allocation11] sm:$0xf]
        %v711 = vld [vmem:[#allocation11 + $0x4] sm:$0xf]
        %v712 = vld [vmem:[#allocation11 + $0x8] sm:$0xf]
        %v713 = vld [vmem:[#allocation11 + $0xc] sm:$0xf]
        %v714 = vld [vmem:[#allocation16] sm:$0x1]
        %v716 = vlaneseq
        %v717 = vshrl.u32 %v716, 7
        %v718 = vsub.s32 0, %v717
        %v719 = vrot.slane %v714, %v718
        %v725 = vunpack.c.l.b16 %v710
        %v726 = vunpack.c.l.b16 %v711
        %v727 = vunpack.c.l.b16 %v712
        %v728 = vunpack.c.l.b16 %v713
        %v729 = vpack.c.b16 %v726, %v725
        %v730 = vpack.c.b16 %v728, %v727
        %733 = vmatprep.subr.bf16.mxu0 0
        %734 = vmatpush1.bf16.msra.mxu0 %v729
        %735 = vmatprep.subr.bf16.mxu0 0
        %736 = vmatpush1.bf16.msra.mxu0 %v730
        %737 = vmatprep.subr.bf16.mxu0 0
        %738 = vmatpush1.bf16.msra.mxu0 0
        %739 = vmatprep.subr.bf16.mxu0 0
        %740 = vmatpush1.bf16.msra.mxu0 0
        %741 = vmatprep.subr.bf16.mxu0 0
        %742 = vmatpush1.bf16.msra.mxu0 0
        %743 = vmatprep.subr.bf16.mxu0 0
        %744 = vmatpush1.bf16.msra.mxu0 0
        %745 = vmatprep.subr.bf16.mxu0 0
        %746 = vmatpush1.bf16.msra.mxu0 0
        %747 = vmatprep.subr.bf16.mxu0 0
        %748 = vmatpush1.bf16.msra.mxu0 0
        %749 = vmatprep.subr.bf16.mxu0 0
        %750 = vmatpush1.bf16.msra.mxu0 0
        %751 = vmatprep.subr.bf16.mxu0 0
        %752 = vmatpush1.bf16.msra.mxu0 0
        %753 = vmatprep.subr.bf16.mxu0 0
        %754 = vmatpush1.bf16.msra.mxu0 0
        %755 = vmatprep.subr.bf16.mxu0 0
        %756 = vmatpush1.bf16.msra.mxu0 0
        %757 = vmatprep.subr.bf16.mxu0 0
        %758 = vmatpush1.bf16.msra.mxu0 0
        %759 = vmatprep.subr.bf16.mxu0 0
        %760 = vmatpush1.bf16.msra.mxu0 0
        %761 = vmatprep.subr.bf16.mxu0 0
        %762 = vmatpush1.bf16.msra.mxu0 0
        %763 = vmatprep.subr.bf16.mxu0 0
        %764 = vmatpush1.bf16.msra.mxu0 0
        %765 = vmatprep.mubr.bf16.mxu0 0
        %766 = vmatmul.mubr.bf16.gmra.mrb[0].mxu0 %v605
        %v767 = vpop.f32.mrb[0].mxu0
        %v768 = vadd.f32 %v719, %v767
        %v769 = vpop.f32.mrb[0].mxu0
        %v770 = vpop.f32.mrb[0].mxu0
        %v771 = vpop.f32.mrb[0].mxu0
        %772 = vdwg.mxu0
        %v773 = vpack.c.bf16 %v642, %v642
        %vm774 = vcmask 60416
        %775 = vst.msk [vmem:[%s532] sm:$0xf] %vm774, %v773
        %v776 = vpack.c.bf16 %v705, %v705
        %777 = vst.msk [vmem:[%s539] sm:$0xf] %vm774, %v776
        %v778 = vpack.c.bf16 %v768, %v768
        %779 = vst.msk [vmem:[%s546] sm:$0xf] %vm774, %v778
        %v781 = vunpack.c.l.b16 %v773
        %v782 = vpack.c.b16 %v781, %v781
        %783 = vrot.lane.b32.xlu0 %v782, 120
        %v784 = vpop.permute.xlu0 %783
        %s786 = scalar_lea.vmem %s532, 4 [#allocation17]
        %787 = vst.msk [vmem:[%s786] sm:$0xf] %vm774, %v784
        %v789 = vunpack.c.l.b16 %v776
        %v790 = vpack.c.b16 %v789, %v789
        %791 = vrot.lane.b32.xlu0 %v790, 120
        %v792 = vpop.permute.xlu0 %791
        %s794 = scalar_lea.vmem %s539, 4 [#allocation18]
        %795 = vst.msk [vmem:[%s794] sm:$0xf] %vm774, %v792
        %v797 = vunpack.c.l.b16 %v778
        %v798 = vpack.c.b16 %v797, %v797
        %799 = vrot.lane.b32.xlu0 %v798, 120
        %v800 = vpop.permute.xlu0 %799
        %s802 = scalar_lea.vmem %s546, 4 [#allocation20]
        %803 = vst.msk [vmem:[%s802] sm:$0xf] %vm774, %v800
        %804 = vrot.lane.b32.xlu0 %v782, 112
        %v805 = vpop.permute.xlu0 %804
        %s807 = scalar_lea.vmem %s532, 8 [#allocation17]
        %808 = vst.msk [vmem:[%s807] sm:$0xf] %vm774, %v805
        %809 = vrot.lane.b32.xlu0 %v790, 112
        %v810 = vpop.permute.xlu0 %809
        %s812 = scalar_lea.vmem %s539, 8 [#allocation18]
        %813 = vst.msk [vmem:[%s812] sm:$0xf] %vm774, %v810
        %814 = vrot.lane.b32.xlu0 %v798, 112
        %v815 = vpop.permute.xlu0 %814
        %s817 = scalar_lea.vmem %s546, 8 [#allocation20]
        %818 = vst.msk [vmem:[%s817] sm:$0xf] %vm774, %v815
        %819 = vrot.lane.b32.xlu0 %v782, 104
        %v820 = vpop.permute.xlu0 %819
        %s822 = scalar_lea.vmem %s532, 12 [#allocation17]
        %823 = vst.msk [vmem:[%s822] sm:$0xf] %vm774, %v820
        %824 = vrot.lane.b32.xlu0 %v790, 104
        %v825 = vpop.permute.xlu0 %824
        %s827 = scalar_lea.vmem %s539, 12 [#allocation18]
        %828 = vst.msk [vmem:[%s827] sm:$0xf] %vm774, %v825
        %829 = vrot.lane.b32.xlu0 %v798, 104
        %v830 = vpop.permute.xlu0 %829
        %s832 = scalar_lea.vmem %s546, 12 [#allocation20]
        %833 = vst.msk [vmem:[%s832] sm:$0xf] %vm774, %v830
        %s834 = sand.u32 %s254, 1
        %s835 = scalar_lea.sflag [#allocation4], %s834
        %s836 = sand.u32 %s254, 1
        %s837 = smul.addr %s836, 16
        %s838 = scalar_lea.vmem [#allocation17], %s837
        %s839 = sand.u32 %s36, 1
        %s840 = scalar_lea.sflag [#allocation19], %s839
        %s841 = sand.u32 %s282, 1
        %s842 = smul.addr %s841, 16
        %s843 = scalar_lea.vmem [#allocation18], %s842
        %s844 = sand.u32 %s36, 1
        %s845 = scalar_lea.sflag [#allocation19], %s844
        %s846 = sand.u32 %s310, 1
        %s847 = smul.addr %s846, 16
        %s848 = scalar_lea.vmem [#allocation20], %s847
        // Predicated region
        $region93: #{tpu_custom_call.1} parent=55 // pred_check
          %p849 = pneg %p264
        $region94: #{tpu_custom_call.1} parent=55 // pred_check_branch
          %851 = sbr.rel (%p849) target = $region96
        $region95: #{tpu_custom_call.1} parent=55 // pred_region
          %s853 = ssub.s32 256, 256
          %854 = vsyncadd %s835, %s853
          %s855 = sadd.s32 %s41, %s40
          %s856 = smul.addr %s855, 64
          %s857 = scalar_lea.hbm %s9, %s856
          %s858 = sshll.u32 %s838, 4
          %s859 = int_to_ptr.vmem [resolvable:$true] %s858
          %864 = dma.vmem_to_hbm [thread:$0]  %s859, 256, %s857, %s835, 64, 128, 4
        $region96: #{tpu_custom_call.1} parent=55 // pred_fallthru
          _
        // Predicated region
        $region97: #{tpu_custom_call.1} parent=55 // pred_check
          %p865 = pneg %p292
        $region98: #{tpu_custom_call.1} parent=55 // pred_check_branch
          %867 = sbr.rel (%p865) target = $region100
        $region99: #{tpu_custom_call.1} parent=55 // pred_region
          %s869 = ssub.s32 256, 256
          %870 = vsyncadd %s840, %s869
          %s871 = sadd.s32 %s41, %s40
          %s872 = smul.addr %s871, 64
          %s873 = scalar_lea.hbm %s10, %s872
          %s874 = sshll.u32 %s843, 4
          %s875 = int_to_ptr.vmem [resolvable:$true] %s874
          %880 = dma.vmem_to_hbm [thread:$0]  %s875, 256, %s873, %s840, 64, 128, 4
        $region100: #{tpu_custom_call.1} parent=55 // pred_fallthru
          _
        // Predicated region
        $region101: #{tpu_custom_call.1} parent=55 // pred_check
          %p881 = pneg %p320
        $region102: #{tpu_custom_call.1} parent=55 // pred_check_branch
          %883 = sbr.rel (%p881) target = $region104
        $region103: #{tpu_custom_call.1} parent=55 // pred_region
          %s885 = ssub.s32 256, 256
          %886 = vsyncadd %s845, %s885
          %s887 = sadd.s32 %s41, %s40
          %s888 = smul.addr %s887, 64
          %s889 = scalar_lea.hbm %s11, %s888
          %s890 = sshll.u32 %s848, 4
          %s891 = int_to_ptr.vmem [resolvable:$true] %s890
          %896 = dma.vmem_to_hbm [thread:$0]  %s891, 256, %s889, %s845, 64, 128, 4
        $region104: #{tpu_custom_call.1} parent=55 // pred_fallthru
          _
      $region56: #{tpu_custom_call.1} parent=5 // pred_fallthru
        _
      %p897 = scmp.le.s32.totalorder 2, %s31
      // Predicated region
      $region105: #{tpu_custom_call.1} parent=5 // pred_check
        %p898 = pneg %p897
      $region106: #{tpu_custom_call.1} parent=5 // pred_check_branch
        %900 = sbr.rel (%p898) target = $region108
      $region107: #{tpu_custom_call.1} parent=5 // pred_region
        %s901 = ssub.s32 %s31, 2
        // Predicated region
        $region109: #{tpu_custom_call.1} parent=107 // pred_check
          %p902 = pneg %p270
        $region110: #{tpu_custom_call.1} parent=107 // pred_check_branch
          %904 = sbr.rel (%p902) target = $region112
        $region111: #{tpu_custom_call.1} parent=107 // pred_region
          %s905 = sand.u32 %s255, 1
          %s906 = scalar_lea.sflag [#allocation4], %s905
          %s907 = sand.u32 %s255, 1
          %s908 = smul.addr %s907, 16
          %s909 = scalar_lea.vmem [#allocation17], %s908
          %910 = dma.done %s906, 256
        $region112: #{tpu_custom_call.1} parent=107 // pred_fallthru
          _
        // Predicated region
        $region113: #{tpu_custom_call.1} parent=107 // pred_check
          %p911 = pneg %p298
        $region114: #{tpu_custom_call.1} parent=107 // pred_check_branch
          %913 = sbr.rel (%p911) target = $region116
        $region115: #{tpu_custom_call.1} parent=107 // pred_region
          %s914 = sand.u32 %s37, 1
          %s915 = scalar_lea.sflag [#allocation19], %s914
          %s916 = sand.u32 %s283, 1
          %s917 = smul.addr %s916, 16
          %s918 = scalar_lea.vmem [#allocation18], %s917
          %919 = dma.done %s915, 256
        $region116: #{tpu_custom_call.1} parent=107 // pred_fallthru
          _
        // Predicated region
        $region117: #{tpu_custom_call.1} parent=107 // pred_check
          %p920 = pneg %p326
        $region118: #{tpu_custom_call.1} parent=107 // pred_check_branch
          %922 = sbr.rel (%p920) target = $region120
        $region119: #{tpu_custom_call.1} parent=107 // pred_region
          %s923 = sand.u32 %s37, 1
          %s924 = scalar_lea.sflag [#allocation19], %s923
          %s925 = sand.u32 %s311, 1
          %s926 = smul.addr %s925, 16
          %s927 = scalar_lea.vmem [#allocation20], %s926
          %928 = dma.done %s924, 256
        $region120: #{tpu_custom_call.1} parent=107 // pred_fallthru
          _
      $region108: #{tpu_custom_call.1} parent=5 // pred_fallthru
        _
    $region6: #{tpu_custom_call.1} parent=1 // loop_footer
      %s35 = sadd.s32 1, %s31
    $region7: #{tpu_custom_call.1} parent=1 // loop_footer_branch
      %30 = sbr.rel target = $region3
    $region8: #{tpu_custom_call.1} parent=1 // loop_exit
      _
    %929 = vsyncpa [#allocation3], 1
    %s930 = scalar_lea.sflag [#allocation3], 1
    %931 = vsyncpa %s930, 1
    %932 = vsyncpa [#allocation6], 1
    %933 = vsyncpa [#allocation9], 1
    %934 = vsyncpa [#allocation12], 1
    %935 = vsyncpa [#allocation15], 1
    %936 = vsyncpa [#allocation4], 1
    %s937 = scalar_lea.sflag [#allocation4], 1
    %938 = vsyncpa %s937, 1
    %939 = vsyncpa [#allocation19], 1
    %s940 = scalar_lea.sflag [#allocation19], 1
    %941 = vsyncpa %s940, 1

</llo_original>
